<compile_context>
chip_gen: v5e
topology: v5e:2x2
jax: 0.10.0
libtpu: 0.0.40
codegen_flags: <defaults>
</compile_context>

<pallas_src>
import functools

import jax
import jax.numpy as jnp
from jax.experimental import pallas as pl
from jax.experimental.pallas import tpu as pltpu

LANE = 128


def _round_up(x, m):
    return ((x + m - 1) // m) * m


def _pad2d(x, rows, cols):
    r, c = x.shape
    return jnp.pad(x, ((0, rows - r), (0, cols - c)))


@functools.lru_cache(maxsize=1)
def _vmem_budget_bytes():
    """Usable VMEM budget per generation (leave headroom for compiler scratch)."""
    cap = 64 * 1024 * 1024  # conservative default (v7x per-TensorCore physical)
    try:
        info = pltpu.get_tpu_info()
        cap = int(getattr(info, "vmem_capacity_bytes", cap)) or cap
    except Exception:
        pass
    cap = min(cap, 128 * 1024 * 1024)
    return (cap * 3) // 4  # ~48 MiB on v7x, ~96 MiB on v5e/v6e


def _divisor_tiles(n, candidates):
    out = [t for t in candidates if n % t == 0]
    assert out, f"dim {n} must be a multiple of {LANE}"
    return out  # descending order preserved


# ----------------------------------------------------------------------------
# Kernel A: dense (row-tiled) matmul with resident RHS, whole-K contraction,
#           optional fused bias + ReLU epilogue.   Used for X @ W.
# ----------------------------------------------------------------------------
def _xform_kernel(x_ref, w_ref, b_ref, o_ref, *, apply_bias, apply_relu):
    acc = jnp.dot(x_ref[...], w_ref[...], preferred_element_type=jnp.float32)
    if apply_bias:
        acc = acc + b_ref[...]
    if apply_relu:
        acc = jnp.maximum(acc, 0.0)
    o_ref[...] = acc.astype(o_ref.dtype)


def _xform_kernel_tiled(x_ref, w_ref, b_ref, o_ref, acc_ref, *, apply_bias, apply_relu):
    k = pl.program_id(1)

    @pl.when(k == 0)
    def _():
        acc_ref[...] = jnp.zeros_like(acc_ref)

    acc_ref[...] += jnp.dot(x_ref[...], w_ref[...],
                            preferred_element_type=jnp.float32)

    @pl.when(k == pl.num_programs(1) - 1)
    def _():
        h = acc_ref[...]
        if apply_bias:
            h = h + b_ref[...]
        if apply_relu:
            h = jnp.maximum(h, 0.0)
        o_ref[...] = h.astype(o_ref.dtype)


def feature_transform(x_bf16, w_bf16, b_f32, *, apply_bias, apply_relu, out_dtype):
    """H_out = maybe_relu(X @ W [+ b]).  W is kept fully resident in VMEM."""
    n_pad, f_in = x_bf16.shape
    f_out = w_bf16.shape[1]
    out_bytes = jnp.dtype(out_dtype).itemsize
    budget = _vmem_budget_bytes()
    bias2d = b_f32.reshape(1, f_out)

    flops = 2 * n_pad * f_in * f_out
    bytes_accessed = (n_pad * f_in * 2 + f_in * f_out * 2
                      + f_out * 4 + n_pad * f_out * out_bytes)
    cost = pl.CostEstimate(flops=flops, transcendentals=0,
                           bytes_accessed=bytes_accessed)

    # preferred plan: whole-K contraction per row tile, W resident (one DMA total)
    for tm in _divisor_tiles(n_pad, (512, 256, 128)):
        need = (2 * tm * f_in * 2          # X double-buffered (bf16)
                + 2 * f_in * f_out * 2     # W (resident; 2 bufs worst case)
                + 2 * tm * f_out * out_bytes
                + 2 * f_out * 4)
        if need <= budget:
            kernel = functools.partial(_xform_kernel,
                                       apply_bias=apply_bias, apply_relu=apply_relu)
            return pl.pallas_call(
                kernel,
                out_shape=jax.ShapeDtypeStruct((n_pad, f_out), out_dtype),
                grid_spec=pltpu.PrefetchScalarGridSpec(
                    num_scalar_prefetch=0,
                    grid=(n_pad // tm,),
                    in_specs=[
                        pl.BlockSpec((tm, f_in), lambda i: (i, 0)),      # X row tile
                        pl.BlockSpec((f_in, f_out), lambda i: (0, 0)),   # W resident
                        pl.BlockSpec((1, f_out), lambda i: (0, 0)),      # bias
                    ],
                    out_specs=pl.BlockSpec((tm, f_out), lambda i: (i, 0)),
                ),
                compiler_params=pltpu.CompilerParams(
                    dimension_semantics=("parallel",),
                    vmem_limit_bytes=budget,
                ),
                cost_estimate=cost,
            )(x_bf16, w_bf16, bias2d)

    # fallback: tiled contraction with f32 VMEM accumulator (huge f_in only)
    tm = _divisor_tiles(n_pad, (256, 128))[0]
    tk = _divisor_tiles(f_in, (512, 256, 128))[0]
    kernel = functools.partial(_xform_kernel_tiled,
                               apply_bias=apply_bias, apply_relu=apply_relu)
    return pl.pallas_call(
        kernel,
        out_shape=jax.ShapeDtypeStruct((n_pad, f_out), out_dtype),
        grid_spec=pltpu.PrefetchScalarGridSpec(
            num_scalar_prefetch=0,
            grid=(n_pad // tm, f_in // tk),
            in_specs=[
                pl.BlockSpec((tm, tk), lambda i, k: (i, k)),
                pl.BlockSpec((tk, f_out), lambda i, k: (k, 0)),
                pl.BlockSpec((1, f_out), lambda i, k: (0, 0)),
            ],
            out_specs=pl.BlockSpec((tm, f_out), lambda i, k: (i, 0)),
            scratch_shapes=[pltpu.VMEM((tm, f_out), jnp.float32)],
        ),
        compiler_params=pltpu.CompilerParams(
            dimension_semantics=("parallel", "arbitrary"),
            vmem_limit_bytes=budget,
        ),
        cost_estimate=cost,
    )(x_bf16, w_bf16, bias2d)


# ----------------------------------------------------------------------------
# Kernel B: aggregation  H = maybe_relu(A @ XW [+ b])
#   grid = (row tiles of A [parallel], contraction over nodes [arbitrary, last])
#   XW resident in VMEM when it fits the per-generation budget (sliced with pl.ds);
#   streamed per k-tile otherwise.  bias/ReLU fused into the k==last finalize.
# ----------------------------------------------------------------------------
def _agg_kernel(a_ref, xw_ref, b_ref, o_ref, acc_ref, *,
                apply_bias, apply_relu, xw_resident, tk):
    k = pl.program_id(1)

    @pl.when(k == 0)
    def _():
        acc_ref[...] = jnp.zeros_like(acc_ref)

    if xw_resident:
        start = pl.multiple_of(k * tk, tk)
        xw_tile = xw_ref[pl.ds(start, tk), :]
    else:
        xw_tile = xw_ref[...]
    acc_ref[...] += jnp.dot(a_ref[...], xw_tile,
                            preferred_element_type=jnp.float32)

    @pl.when(k == pl.num_programs(1) - 1)
    def _():
        h = acc_ref[...]
        if apply_bias:
            h = h + b_ref[...]
        if apply_relu:
            h = jnp.maximum(h, 0.0)
        o_ref[...] = h.astype(o_ref.dtype)


def aggregate(a_bf16, xw_bf16, b_f32, *, apply_bias, apply_relu, out_dtype):
    n_pad = a_bf16.shape[0]
    f_out = xw_bf16.shape[1]
    out_bytes = jnp.dtype(out_dtype).itemsize
    budget = _vmem_budget_bytes()

    tm_cands = _divisor_tiles(n_pad, (512, 256, 128))
    tk_cands = _divisor_tiles(n_pad, (2048, 1024, 512, 256, 128))

    def fits(tm, tk, resident):
        a_bytes = 2 * tm * tk * 2                                   # A double-buffered bf16
        xw_bytes = (2 * n_pad * f_out * 2) if resident else (2 * tk * f_out * 2)
        acc_bytes = tm * f_out * 4
        out_bytes_tot = 2 * tm * f_out * out_bytes
        return a_bytes + xw_bytes + acc_bytes + out_bytes_tot + 2 * f_out * 4 <= budget

    plan = None
    for resident in (True, False):                                  # prefer residency
        for tm in tm_cands:
            for tk in tk_cands:
                if fits(tm, tk, resident):
                    plan = (tm, tk, resident)
                    break
            if plan:
                break
        if plan:
            break
    if plan is None:
        plan = (128, 128, False)
    tm, tk, xw_resident = plan

    kernel = functools.partial(_agg_kernel, apply_bias=apply_bias,
                               apply_relu=apply_relu,
                               xw_resident=xw_resident, tk=tk)

    if xw_resident:
        xw_spec = pl.BlockSpec((n_pad, f_out), lambda i, k: (0, 0))   # DMA once, resident
    else:
        xw_spec = pl.BlockSpec((tk, f_out), lambda i, k: (k, 0))      # streamed fallback

    flops = 2 * n_pad * n_pad * f_out
    bytes_accessed = (n_pad * n_pad * 2 + n_pad * f_out * 2
                      + f_out * 4 + n_pad * f_out * out_bytes)

    return pl.pallas_call(
        kernel,
        out_shape=jax.ShapeDtypeStruct((n_pad, f_out), out_dtype),
        grid_spec=pltpu.PrefetchScalarGridSpec(
            num_scalar_prefetch=0,
            grid=(n_pad // tm, n_pad // tk),
            in_specs=[
                pl.BlockSpec((tm, tk), lambda i, k: (i, k)),          # A tile (streamed bf16)
                xw_spec,
                pl.BlockSpec((1, f_out), lambda i, k: (0, 0)),        # bias (f32)
            ],
            out_specs=pl.BlockSpec((tm, f_out), lambda i, k: (i, 0)),
            scratch_shapes=[pltpu.VMEM((tm, f_out), jnp.float32)],
        ),
        compiler_params=pltpu.CompilerParams(
            dimension_semantics=("parallel", "arbitrary"),
            vmem_limit_bytes=budget,
        ),
        cost_estimate=pl.CostEstimate(
            flops=flops, transcendentals=0, bytes_accessed=bytes_accessed),
    )(a_bf16, xw_bf16, b_f32.reshape(1, f_out))


# ----------------------------------------------------------------------------
# Dense normalized adjacency (PyG gcn_norm with add_remaining_self_loops)
# ----------------------------------------------------------------------------
def build_normalized_adjacency(edge_index, edge_weight, num_nodes):
    src, dst = edge_index[0], edge_index[1]
    w = edge_weight.astype(jnp.float32)
    a = jnp.zeros((num_nodes, num_nodes), jnp.float32)
    a = a.at[dst, src].add(w)                     # aggregate over incoming edges
    # add_remaining_self_loops: only nodes WITHOUT an existing self-loop get +1
    self_mask = (src == dst).astype(jnp.float32)
    has_self = jnp.zeros((num_nodes,), jnp.float32).at[src].add(self_mask) > 0
    a = a + jnp.diag(jnp.where(has_self, 0.0, 1.0))
    deg = jnp.sum(a, axis=1)
    d_inv_sqrt = jnp.where(deg > 0, 1.0 / jnp.sqrt(deg), 0.0)
    return d_inv_sqrt[:, None] * a * d_inv_sqrt[None, :]


# ----------------------------------------------------------------------------
# BasicNet forward (inference mode)
# ----------------------------------------------------------------------------
class BasicNetPallas:
    def __init__(self, in_feats, n_hidden, n_classes, n_layers, dropout, key):
        if n_layers == 1:
            dims = [(in_feats, n_classes)]
        else:
            dims = [(in_feats, n_hidden)]
            for _ in range(n_layers - 1):
                dims.append((n_hidden, n_hidden))
            dims.append((n_hidden, n_classes))
        self.dropout = dropout  # inference -> identity
        self.n_classes = n_classes
        self.params = []
        for li, (fi, fo) in enumerate(dims):
            kw, kb = jax.random.split(jax.random.fold_in(key, li))
            scale = 1.0 / jnp.sqrt(jnp.float32(fi))
            w = jax.random.uniform(kw, (fi, fo), jnp.float32, -scale, scale)
            b = jax.random.uniform(kb, (fo,), jnp.float32, -scale, scale)
            self.params.append((w, b))
        # whole forward (adjacency build + padding + casts + all pallas_calls)
        # compiled into ONE XLA program
        self._jitted = jax.jit(self._forward)

    def _forward(self, x, edge_index, edge_weight, params):
        n = x.shape[0]
        n_pad = _round_up(n, LANE)

        a_norm = build_normalized_adjacency(edge_index, edge_weight, n)
        # bf16 adjacency: halves bytes of the dominant streamed operand, 2x MXU
        # throughput; accumulation stays f32 in-kernel.
        a_bf16 = _pad2d(a_norm, n_pad, n_pad).astype(jnp.bfloat16)

        fin_pad = _round_up(x.shape[1], LANE)
        h = _pad2d(x.astype(jnp.float32), n_pad, fin_pad).astype(jnp.bfloat16)

        n_layers = len(params)
        for li, (w, b) in enumerate(params):
            is_last = li == n_layers - 1
            fi, fo = w.shape
            fi_p, fo_p = _round_up(fi, LANE), _round_up(fo, LANE)
            wp = _pad2d(w, fi_p, fo_p).astype(jnp.bfloat16)
            bp = jnp.pad(b, (0, fo_p - fo)).astype(jnp.float32)
            out_dtype = jnp.float32 if is_last else jnp.bfloat16
            relu = not is_last

            if fo_p <= fi_p:
                # A @ (H @ W): aggregate on the narrower (output) side
                xw = feature_transform(h, wp, bp, apply_bias=False,
                                       apply_relu=False, out_dtype=jnp.bfloat16)
                h = aggregate(a_bf16, xw, bp, apply_bias=True,
                              apply_relu=relu, out_dtype=out_dtype)
            else:
                # (A @ H) @ W: aggregate on the narrower (input) side
                ah = aggregate(a_bf16, h, bp, apply_bias=False,
                               apply_relu=False, out_dtype=jnp.bfloat16)
                h = feature_transform(ah, wp, bp, apply_bias=True,
                                      apply_relu=relu, out_dtype=out_dtype)
            # F.dropout(training=False) -> identity
        return h[:n, :self.n_classes]

    def __call__(self, x, edge_index, edge_weight):
        return self._jitted(x, edge_index, edge_weight, self.params)


# pure-JAX reference (same bf16-feed / f32-accumulate precision and the same
# per-layer matmul association as the kernels)
def reference_forward(net, x, edge_index, edge_weight):
    n = x.shape[0]
    a = build_normalized_adjacency(edge_index, edge_weight, n).astype(jnp.bfloat16)
    h = x.astype(jnp.bfloat16)
    params = net.params
    for li, (w, b) in enumerate(params):
        is_last = li == len(params) - 1
        fi, fo = w.shape
        fi_p, fo_p = _round_up(fi, LANE), _round_up(fo, LANE)
        wb = w.astype(jnp.bfloat16)
        if fo_p <= fi_p:
            xw = jnp.dot(h, wb, preferred_element_type=jnp.float32).astype(jnp.bfloat16)
            hf = jnp.dot(a, xw, preferred_element_type=jnp.float32) + b
        else:
            ah = jnp.dot(a, h, preferred_element_type=jnp.float32).astype(jnp.bfloat16)
            hf = jnp.dot(ah, wb, preferred_element_type=jnp.float32) + b
        if not is_last:
            h = jnp.maximum(hf, 0.0).astype(jnp.bfloat16)
        else:
            h = hf
    return h


if __name__ == "__main__":
    key = jax.random.PRNGKey(0)
    k_x, k_e, k_w, k_p = jax.random.split(key, 4)

    # small graph: N=8 nodes, E=16 edges, in_feats=16, hidden=32, classes=8
    N, E = 8, 16
    in_feats, n_hidden, n_classes, n_layers = 16, 32, 8, 2

    x = jax.random.normal(k_x, (N, in_feats), jnp.float32)
    edge_index = jax.random.randint(k_e, (2, E), 0, N, jnp.int32)
    edge_weight = jax.random.uniform(k_w, (E,), jnp.float32, 0.5, 1.5)

    net = BasicNetPallas(in_feats, n_hidden, n_classes, n_layers,
                         dropout=0.5, key=k_p)

    out = jax.block_until_ready(net(x, edge_index, edge_weight))

    ref = reference_forward(net, x, edge_index, edge_weight)
    assert out.shape == (N, n_classes)
    assert jnp.allclose(out, ref, atol=2e-3, rtol=2e-3), "mismatch vs reference"

    print("KERNEL_OK")
</pallas_src>

<mosaic_0001>
module attributes {stable_mosaic.version = 11 : i64} {
  func.func @_xform_kernel(%arg0: i32, %arg1: memref<128x128xbf16, #tpu.memory_space<vmem>>, %arg2: memref<128x128xbf16, #tpu.memory_space<vmem>>, %arg3: memref<1x128xf32, #tpu.memory_space<vmem>>, %arg4: memref<128x128xbf16, #tpu.memory_space<vmem>>) attributes {dimension_semantics = [#tpu.dimension_semantics<parallel>], iteration_bounds = array<i64: 1>, scalar_prefetch = 0 : i64, scratch_operands = 0 : i64, tpu.core_type = #tpu.core_type<tc>, window_params = [{transform_indices = @transform_0, window_bounds = array<i64: 128, 128>}, {pipeline_mode = #tpu.pipeline_mode<synchronous>, transform_indices = @transform_1, window_bounds = array<i64: 128, 128>}, {pipeline_mode = #tpu.pipeline_mode<synchronous>, transform_indices = @transform_2, window_bounds = array<i64: 1, 128>}, {transform_indices = @transform_3, window_bounds = array<i64: 128, 128>}]} {
    %c0 = arith.constant 0 : index
    %c0_0 = arith.constant 0 : index
    %0 = vector.load %arg1[%c0, %c0_0] : memref<128x128xbf16, #tpu.memory_space<vmem>>, vector<128x128xbf16>
    %c0_1 = arith.constant 0 : index
    %c0_2 = arith.constant 0 : index
    %1 = vector.load %arg2[%c0_1, %c0_2] : memref<128x128xbf16, #tpu.memory_space<vmem>>, vector<128x128xbf16>
    %cst = arith.constant dense<0.000000e+00> : vector<128x128xf32>
    %2 = tpu.matmul %0, %1, %cst {dimension_numbers = #tpu.dot_dimension_numbers<[1], [0], [0], [1], [0, 0, 1, 1], [], []>} : vector<128x128xbf16>, vector<128x128xbf16>, vector<128x128xf32> -> vector<128x128xf32>
    %3 = arith.truncf %2 : vector<128x128xf32> to vector<128x128xbf16>
    %c0_3 = arith.constant 0 : index
    %c0_4 = arith.constant 0 : index
    %4 = vector.load %arg4[%c0_3, %c0_4] : memref<128x128xbf16, #tpu.memory_space<vmem>>, vector<128x128xbf16>
    tpu.vector_store %arg4[%c0_3, %c0_4], %3 {strides = array<i32>} : memref<128x128xbf16, #tpu.memory_space<vmem>>, vector<128x128xbf16>,
    return
  }
  func.func @transform_0(%arg0: i32) -> (i32, i32) {
    %c0_i32 = arith.constant 0 : i32
    %c0_i32_0 = arith.constant 0 : i32
    return %arg0, %c0_i32 : i32, i32
  }
  func.func @transform_1(%arg0: i32) -> (i32, i32) {
    %c0_i32 = arith.constant 0 : i32
    %c0_i32_0 = arith.constant 0 : i32
    %c0_i32_1 = arith.constant 0 : i32
    return %c0_i32, %c0_i32_0 : i32, i32
  }
  func.func @transform_2(%arg0: i32) -> (i32, i32) {
    %c0_i32 = arith.constant 0 : i32
    %c0_i32_0 = arith.constant 0 : i32
    %c0_i32_1 = arith.constant 0 : i32
    return %c0_i32, %c0_i32_0 : i32, i32
  }
  func.func @transform_3(%arg0: i32) -> (i32, i32) {
    %c0_i32 = arith.constant 0 : i32
    %c0_i32_0 = arith.constant 0 : i32
    return %arg0, %c0_i32 : i32, i32
  }
}

module attributes {stable_mosaic.version = 11 : i64} {
  func.func @_agg_kernel(%arg0: i32, %arg1: i32, %arg2: memref<128x128xbf16, #tpu.memory_space<vmem>>, %arg3: memref<128x128xbf16, #tpu.memory_space<vmem>>, %arg4: memref<1x128xf32, #tpu.memory_space<vmem>>, %arg5: memref<128x128xbf16, #tpu.memory_space<vmem>>, %arg6: memref<128x128xf32, #tpu.memory_space<vmem>>) attributes {dimension_semantics = [#tpu.dimension_semantics<parallel>, #tpu.dimension_semantics<arbitrary>], iteration_bounds = array<i64: 1, 1>, scalar_prefetch = 0 : i64, scratch_operands = 1 : i64, tpu.core_type = #tpu.core_type<tc>, window_params = [{transform_indices = @transform_0, window_bounds = array<i64: 128, 128>}, {pipeline_mode = #tpu.pipeline_mode<synchronous>, transform_indices = @transform_1, window_bounds = array<i64: 128, 128>}, {pipeline_mode = #tpu.pipeline_mode<synchronous>, transform_indices = @transform_2, window_bounds = array<i64: 1, 128>}, {transform_indices = @transform_3, window_bounds = array<i64: 128, 128>}]} {
    %c0_i32 = arith.constant 0 : i32
    %0 = arith.cmpi eq, %arg1, %c0_i32 : i32
    %1 = arith.extui %0 : i1 to i32
    %c0_i32_0 = arith.constant 0 : i32
    %2 = arith.cmpi ne, %1, %c0_i32_0 : i32
    scf.if %2 {
      %cst_9 = arith.constant 0.000000e+00 : f32
      %15 = vector.broadcast %cst_9 : f32 to vector<128x128xf32>
      %c0_10 = arith.constant 0 : index
      %c0_11 = arith.constant 0 : index
      %16 = vector.load %arg6[%c0_10, %c0_11] : memref<128x128xf32, #tpu.memory_space<vmem>>, vector<128x128xf32>
      tpu.vector_store %arg6[%c0_10, %c0_11], %15 {strides = array<i32>} : memref<128x128xf32, #tpu.memory_space<vmem>>, vector<128x128xf32>,
    } else {
    }
    %c128_i32 = arith.constant 128 : i32
    %3 = arith.muli %arg1, %c128_i32 : i32
    %4 = tpu.assume_multiple %3, 128 : i32
    %5 = arith.index_cast %4 : i32 to index
    %c0 = arith.constant 0 : index
    %6 = vector.load %arg3[%5, %c0] : memref<128x128xbf16, #tpu.memory_space<vmem>>, vector<128x128xbf16>
    %c0_1 = arith.constant 0 : index
    %c0_2 = arith.constant 0 : index
    %7 = vector.load %arg6[%c0_1, %c0_2] : memref<128x128xf32, #tpu.memory_space<vmem>>, vector<128x128xf32>
    %c0_3 = arith.constant 0 : index
    %c0_4 = arith.constant 0 : index
    %8 = vector.load %arg2[%c0_3, %c0_4] : memref<128x128xbf16, #tpu.memory_space<vmem>>, vector<128x128xbf16>
    %cst = arith.constant dense<0.000000e+00> : vector<128x128xf32>
    %9 = tpu.matmul %8, %6, %cst {dimension_numbers = #tpu.dot_dimension_numbers<[1], [0], [0], [1], [0, 0, 1, 1], [], []>} : vector<128x128xbf16>, vector<128x128xbf16>, vector<128x128xf32> -> vector<128x128xf32>
    %10 = arith.addf %7, %9 : vector<128x128xf32>
    %c0_5 = arith.constant 0 : index
    %c0_6 = arith.constant 0 : index
    %11 = vector.load %arg6[%c0_5, %c0_6] : memref<128x128xf32, #tpu.memory_space<vmem>>, vector<128x128xf32>
    tpu.vector_store %arg6[%c0_5, %c0_6], %10 {strides = array<i32>} : memref<128x128xf32, #tpu.memory_space<vmem>>, vector<128x128xf32>,
    %c0_i32_7 = arith.constant 0 : i32
    %12 = arith.cmpi eq, %arg1, %c0_i32_7 : i32
    %13 = arith.extui %12 : i1 to i32
    %c0_i32_8 = arith.constant 0 : i32
    %14 = arith.cmpi ne, %13, %c0_i32_8 : i32
    scf.if %14 {
      %c0_9 = arith.constant 0 : index
      %c0_10 = arith.constant 0 : index
      %15 = vector.load %arg6[%c0_9, %c0_10] : memref<128x128xf32, #tpu.memory_space<vmem>>, vector<128x128xf32>
      %c0_11 = arith.constant 0 : index
      %c0_12 = arith.constant 0 : index
      %16 = vector.load %arg4[%c0_11, %c0_12] : memref<1x128xf32, #tpu.memory_space<vmem>>, vector<1x128xf32>
      %17 = vector.broadcast %16 : vector<1x128xf32> to vector<128x128xf32>
      %18 = arith.addf %15, %17 : vector<128x128xf32>
      %cst_13 = arith.constant 0.000000e+00 : f32
      %19 = vector.broadcast %cst_13 : f32 to vector<128x128xf32>
      %20 = arith.maximumf %18, %19 : vector<128x128xf32>
      %21 = arith.truncf %20 : vector<128x128xf32> to vector<128x128xbf16>
      %c0_14 = arith.constant 0 : index
      %c0_15 = arith.constant 0 : index
      %22 = vector.load %arg5[%c0_14, %c0_15] : memref<128x128xbf16, #tpu.memory_space<vmem>>, vector<128x128xbf16>
      tpu.vector_store %arg5[%c0_14, %c0_15], %21 {strides = array<i32>} : memref<128x128xbf16, #tpu.memory_space<vmem>>, vector<128x128xbf16>,
    } else {
    }
    return
  }
  func.func @transform_0(%arg0: i32, %arg1: i32) -> (i32, i32) {
    %c0_i32 = arith.constant 0 : i32
    return %arg0, %arg1 : i32, i32
  }
  func.func @transform_1(%arg0: i32, %arg1: i32) -> (i32, i32) {
    %c0_i32 = arith.constant 0 : i32
    %c0_i32_0 = arith.constant 0 : i32
    %c0_i32_1 = arith.constant 0 : i32
    return %c0_i32, %c0_i32_0 : i32, i32
  }
  func.func @transform_2(%arg0: i32, %arg1: i32) -> (i32, i32) {
    %c0_i32 = arith.constant 0 : i32
    %c0_i32_0 = arith.constant 0 : i32
    %c0_i32_1 = arith.constant 0 : i32
    return %c0_i32, %c0_i32_0 : i32, i32
  }
  func.func @transform_3(%arg0: i32, %arg1: i32) -> (i32, i32) {
    %c0_i32 = arith.constant 0 : i32
    %c0_i32_0 = arith.constant 0 : i32
    return %arg0, %c0_i32 : i32, i32
  }
}

module attributes {stable_mosaic.version = 11 : i64} {
  func.func @_agg_kernel(%arg0: i32, %arg1: i32, %arg2: memref<128x128xbf16, #tpu.memory_space<vmem>>, %arg3: memref<128x128xbf16, #tpu.memory_space<vmem>>, %arg4: memref<1x128xf32, #tpu.memory_space<vmem>>, %arg5: memref<128x128xf32, #tpu.memory_space<vmem>>, %arg6: memref<128x128xf32, #tpu.memory_space<vmem>>) attributes {dimension_semantics = [#tpu.dimension_semantics<parallel>, #tpu.dimension_semantics<arbitrary>], iteration_bounds = array<i64: 1, 1>, scalar_prefetch = 0 : i64, scratch_operands = 1 : i64, tpu.core_type = #tpu.core_type<tc>, window_params = [{transform_indices = @transform_0, window_bounds = array<i64: 128, 128>}, {pipeline_mode = #tpu.pipeline_mode<synchronous>, transform_indices = @transform_1, window_bounds = array<i64: 128, 128>}, {pipeline_mode = #tpu.pipeline_mode<synchronous>, transform_indices = @transform_2, window_bounds = array<i64: 1, 128>}, {transform_indices = @transform_3, window_bounds = array<i64: 128, 128>}]} {
    %c0_i32 = arith.constant 0 : i32
    %0 = arith.cmpi eq, %arg1, %c0_i32 : i32
    %1 = arith.extui %0 : i1 to i32
    %c0_i32_0 = arith.constant 0 : i32
    %2 = arith.cmpi ne, %1, %c0_i32_0 : i32
    scf.if %2 {
      %cst_9 = arith.constant 0.000000e+00 : f32
      %15 = vector.broadcast %cst_9 : f32 to vector<128x128xf32>
      %c0_10 = arith.constant 0 : index
      %c0_11 = arith.constant 0 : index
      %16 = vector.load %arg6[%c0_10, %c0_11] : memref<128x128xf32, #tpu.memory_space<vmem>>, vector<128x128xf32>
      tpu.vector_store %arg6[%c0_10, %c0_11], %15 {strides = array<i32>} : memref<128x128xf32, #tpu.memory_space<vmem>>, vector<128x128xf32>,
    } else {
    }
    %c128_i32 = arith.constant 128 : i32
    %3 = arith.muli %arg1, %c128_i32 : i32
    %4 = tpu.assume_multiple %3, 128 : i32
    %5 = arith.index_cast %4 : i32 to index
    %c0 = arith.constant 0 : index
    %6 = vector.load %arg3[%5, %c0] : memref<128x128xbf16, #tpu.memory_space<vmem>>, vector<128x128xbf16>
    %c0_1 = arith.constant 0 : index
    %c0_2 = arith.constant 0 : index
    %7 = vector.load %arg6[%c0_1, %c0_2] : memref<128x128xf32, #tpu.memory_space<vmem>>, vector<128x128xf32>
    %c0_3 = arith.constant 0 : index
    %c0_4 = arith.constant 0 : index
    %8 = vector.load %arg2[%c0_3, %c0_4] : memref<128x128xbf16, #tpu.memory_space<vmem>>, vector<128x128xbf16>
    %cst = arith.constant dense<0.000000e+00> : vector<128x128xf32>
    %9 = tpu.matmul %8, %6, %cst {dimension_numbers = #tpu.dot_dimension_numbers<[1], [0], [0], [1], [0, 0, 1, 1], [], []>} : vector<128x128xbf16>, vector<128x128xbf16>, vector<128x128xf32> -> vector<128x128xf32>
    %10 = arith.addf %7, %9 : vector<128x128xf32>
    %c0_5 = arith.constant 0 : index
    %c0_6 = arith.constant 0 : index
    %11 = vector.load %arg6[%c0_5, %c0_6] : memref<128x128xf32, #tpu.memory_space<vmem>>, vector<128x128xf32>
    tpu.vector_store %arg6[%c0_5, %c0_6], %10 {strides = array<i32>} : memref<128x128xf32, #tpu.memory_space<vmem>>, vector<128x128xf32>,
    %c0_i32_7 = arith.constant 0 : i32
    %12 = arith.cmpi eq, %arg1, %c0_i32_7 : i32
    %13 = arith.extui %12 : i1 to i32
    %c0_i32_8 = arith.constant 0 : i32
    %14 = arith.cmpi ne, %13, %c0_i32_8 : i32
    scf.if %14 {
      %c0_9 = arith.constant 0 : index
      %c0_10 = arith.constant 0 : index
      %15 = vector.load %arg6[%c0_9, %c0_10] : memref<128x128xf32, #tpu.memory_space<vmem>>, vector<128x128xf32>
      %c0_11 = arith.constant 0 : index
      %c0_12 = arith.constant 0 : index
      %16 = vector.load %arg4[%c0_11, %c0_12] : memref<1x128xf32, #tpu.memory_space<vmem>>, vector<1x128xf32>
      %17 = vector.broadcast %16 : vector<1x128xf32> to vector<128x128xf32>
      %18 = arith.addf %15, %17 : vector<128x128xf32>
      %c0_13 = arith.constant 0 : index
      %c0_14 = arith.constant 0 : index
      %19 = vector.load %arg5[%c0_13, %c0_14] : memref<128x128xf32, #tpu.memory_space<vmem>>, vector<128x128xf32>
      tpu.vector_store %arg5[%c0_13, %c0_14], %18 {strides = array<i32>} : memref<128x128xf32, #tpu.memory_space<vmem>>, vector<128x128xf32>,
    } else {
    }
    return
  }
  func.func @transform_0(%arg0: i32, %arg1: i32) -> (i32, i32) {
    %c0_i32 = arith.constant 0 : i32
    return %arg0, %arg1 : i32, i32
  }
  func.func @transform_1(%arg0: i32, %arg1: i32) -> (i32, i32) {
    %c0_i32 = arith.constant 0 : i32
    %c0_i32_0 = arith.constant 0 : i32
    %c0_i32_1 = arith.constant 0 : i32
    return %c0_i32, %c0_i32_0 : i32, i32
  }
  func.func @transform_2(%arg0: i32, %arg1: i32) -> (i32, i32) {
    %c0_i32 = arith.constant 0 : i32
    %c0_i32_0 = arith.constant 0 : i32
    %c0_i32_1 = arith.constant 0 : i32
    return %c0_i32, %c0_i32_0 : i32, i32
  }
  func.func @transform_3(%arg0: i32, %arg1: i32) -> (i32, i32) {
    %c0_i32 = arith.constant 0 : i32
    %c0_i32_0 = arith.constant 0 : i32
    return %arg0, %c0_i32 : i32, i32
  }
}

</mosaic_0001>

<llo_original>
// kernel: _forward.6
$region0: #{_forward.6}
  #allocation0 [shape = 'u32[]', space=smem, size = 0x4, offset = 0x4, fixed_abs, tag = 'smem constant byte address 0x4 - core index']
  #allocation1 [shape = 'u32[72,128]{1,0:T(1,128)}', space=vmem, size = 0x9000, scoped, tag = 'internal scratch']
  %s0 = inlined_call_operand.vmem [shape: bf16[128,128], index: 0, kind: input, shape index: {}]
  %s1 = inlined_call_operand.vmem [shape: bf16[128,128], index: 1, kind: input, shape index: {}]
  %s2 = inlined_call_operand.vmem [shape: f32[1,128], index: 2, kind: input, shape index: {}]
  %s3 = inlined_call_operand.vmem [shape: bf16[128,128], index: 3, kind: output, shape index: {}]
  %s4 = sld [smem:[#allocation0]]
  $region22: #{_forward.6} parent=0
    _
  %s6 = ssub.s32 1, %s4
  %s7 = scalar_select 0, %s6, %s4
  // Predicated region
  $region2: #{_forward.6} parent=0 // pred_check
    _
  $region3: #{_forward.6} parent=0 // pred_check_branch
    %9 = sbr.rel (0) target = $region5
  $region4: #{_forward.6} parent=0 // pred_region
    _
  $region5: #{_forward.6} parent=0 // pred_fallthru
    _
  // Predicated region
  $region6: #{_forward.6} parent=0 // pred_check
    _
  $region7: #{_forward.6} parent=0 // pred_check_branch
    %11 = sbr.rel (0) target = $region9
  $region8: #{_forward.6} parent=0 // pred_region
    _
  $region9: #{_forward.6} parent=0 // pred_fallthru
    _
  // Predicated region
  $region10: #{_forward.6} parent=0 // pred_check
    _
  $region11: #{_forward.6} parent=0 // pred_check_branch
    %13 = sbr.rel (0) target = $region13
  $region12: #{_forward.6} parent=0 // pred_region
    _
  $region13: #{_forward.6} parent=0 // pred_fallthru
    _
  %v14 = vld [vmem:[%s0] sm:$0xf]
  %v15 = vld [vmem:[%s0 + $0x4] sm:$0xf]
  %v16 = vld [vmem:[%s0 + $0x8] sm:$0xf]
  %v17 = vld [vmem:[%s0 + $0xc] sm:$0xf]
  %v18 = vld [vmem:[%s0 + $0x10] sm:$0xf]
  %v19 = vld [vmem:[%s0 + $0x14] sm:$0xf]
  %v20 = vld [vmem:[%s0 + $0x18] sm:$0xf]
  %v21 = vld [vmem:[%s0 + $0x1c] sm:$0xf]
  %v22 = vld [vmem:[%s0 + $0x20] sm:$0xf]
  %v23 = vld [vmem:[%s0 + $0x24] sm:$0xf]
  %v24 = vld [vmem:[%s0 + $0x28] sm:$0xf]
  %v25 = vld [vmem:[%s0 + $0x2c] sm:$0xf]
  %v26 = vld [vmem:[%s0 + $0x30] sm:$0xf]
  %v27 = vld [vmem:[%s0 + $0x34] sm:$0xf]
  %v28 = vld [vmem:[%s0 + $0x38] sm:$0xf]
  %v29 = vld [vmem:[%s0 + $0x3c] sm:$0xf]
  %v30 = vld [vmem:[%s1] sm:$0xf]
  %v31 = vld [vmem:[%s1 + $0x4] sm:$0xf]
  %v32 = vld [vmem:[%s1 + $0x8] sm:$0xf]
  %v33 = vld [vmem:[%s1 + $0xc] sm:$0xf]
  %v34 = vld [vmem:[%s1 + $0x10] sm:$0xf]
  %v35 = vld [vmem:[%s1 + $0x14] sm:$0xf]
  %v36 = vld [vmem:[%s1 + $0x18] sm:$0xf]
  %v37 = vld [vmem:[%s1 + $0x1c] sm:$0xf]
  %v38 = vld [vmem:[%s1 + $0x20] sm:$0xf]
  %v39 = vld [vmem:[%s1 + $0x24] sm:$0xf]
  %v40 = vld [vmem:[%s1 + $0x28] sm:$0xf]
  %v41 = vld [vmem:[%s1 + $0x2c] sm:$0xf]
  %v42 = vld [vmem:[%s1 + $0x30] sm:$0xf]
  %v43 = vld [vmem:[%s1 + $0x34] sm:$0xf]
  %v44 = vld [vmem:[%s1 + $0x38] sm:$0xf]
  %v45 = vld [vmem:[%s1 + $0x3c] sm:$0xf]
  %v62 = vunpack.c.l.b16 %v14
  %v63 = vunpack.c.l.b16 %v15
  %v64 = vunpack.c.l.b16 %v16
  %v65 = vunpack.c.l.b16 %v17
  %v66 = vunpack.c.l.b16 %v18
  %v67 = vunpack.c.l.b16 %v19
  %v68 = vunpack.c.l.b16 %v20
  %v69 = vunpack.c.l.b16 %v21
  %v70 = vunpack.c.l.b16 %v22
  %v71 = vunpack.c.l.b16 %v23
  %v72 = vunpack.c.l.b16 %v24
  %v73 = vunpack.c.l.b16 %v25
  %v74 = vunpack.c.l.b16 %v26
  %v75 = vunpack.c.l.b16 %v27
  %v76 = vunpack.c.l.b16 %v28
  %v77 = vunpack.c.l.b16 %v29
  %v78 = vpack.c.b16 %v63, %v62
  %v79 = vpack.c.b16 %v65, %v64
  %v80 = vpack.c.b16 %v67, %v66
  %v81 = vpack.c.b16 %v69, %v68
  %v82 = vpack.c.b16 %v71, %v70
  %v83 = vpack.c.b16 %v73, %v72
  %v84 = vpack.c.b16 %v75, %v74
  %v85 = vpack.c.b16 %v77, %v76
  %v110 = vunpack.c.l.b16 %v30
  %v111 = vunpack.c.l.b16 %v31
  %v112 = vunpack.c.l.b16 %v32
  %v113 = vunpack.c.l.b16 %v33
  %v114 = vunpack.c.l.b16 %v34
  %v115 = vunpack.c.l.b16 %v35
  %v116 = vunpack.c.l.b16 %v36
  %v117 = vunpack.c.l.b16 %v37
  %v118 = vunpack.c.l.b16 %v38
  %v119 = vunpack.c.l.b16 %v39
  %v120 = vunpack.c.l.b16 %v40
  %v121 = vunpack.c.l.b16 %v41
  %v122 = vunpack.c.l.b16 %v42
  %v123 = vunpack.c.l.b16 %v43
  %v124 = vunpack.c.l.b16 %v44
  %v125 = vunpack.c.l.b16 %v45
  %v126 = vpack.c.b16 %v111, %v110
  %v127 = vpack.c.b16 %v113, %v112
  %v128 = vpack.c.b16 %v115, %v114
  %v129 = vpack.c.b16 %v117, %v116
  %v130 = vpack.c.b16 %v119, %v118
  %v131 = vpack.c.b16 %v121, %v120
  %v132 = vpack.c.b16 %v123, %v122
  %v133 = vpack.c.b16 %v125, %v124
  %142 = vmatpush.bf16.msra.mxu0 %v133
  %143 = vmatpush.bf16.msra.mxu0 %v132
  %144 = vmatpush.bf16.msra.mxu0 %v131
  %145 = vmatpush.bf16.msra.mxu0 %v130
  %146 = vmatpush.bf16.msra.mxu0 %v129
  %147 = vmatpush.bf16.msra.mxu0 %v128
  %148 = vmatpush.bf16.msra.mxu0 %v127
  %149 = vmatpush.bf16.msra.mxu0 %v126
  %150 = vmatmul.bf16.gmra.mxu0 %v78
  %v151 = vpop.f32.mrf.mxu0
  %v152 = vadd.f32 0.0, %v151
  %v153 = vpop.f32.mrf.mxu0
  %v154 = vadd.f32 0.0, %v153
  %155 = vmatmul.bf16.gmra.mxu0 %v79
  %v156 = vpop.f32.mrf.mxu0
  %v157 = vadd.f32 0.0, %v156
  %v158 = vpop.f32.mrf.mxu0
  %v159 = vadd.f32 0.0, %v158
  %160 = vmatmul.bf16.gmra.mxu0 %v80
  %v161 = vpop.f32.mrf.mxu0
  %v162 = vadd.f32 0.0, %v161
  %v163 = vpop.f32.mrf.mxu0
  %v164 = vadd.f32 0.0, %v163
  %165 = vmatmul.bf16.gmra.mxu0 %v81
  %v166 = vpop.f32.mrf.mxu0
  %v167 = vadd.f32 0.0, %v166
  %v168 = vpop.f32.mrf.mxu0
  %v169 = vadd.f32 0.0, %v168
  %170 = vmatmul.bf16.gmra.mxu0 %v82
  %v171 = vpop.f32.mrf.mxu0
  %v172 = vadd.f32 0.0, %v171
  %v173 = vpop.f32.mrf.mxu0
  %v174 = vadd.f32 0.0, %v173
  %175 = vmatmul.bf16.gmra.mxu0 %v83
  %v176 = vpop.f32.mrf.mxu0
  %v177 = vadd.f32 0.0, %v176
  %v178 = vpop.f32.mrf.mxu0
  %v179 = vadd.f32 0.0, %v178
  %180 = vmatmul.bf16.gmra.mxu0 %v84
  %v181 = vpop.f32.mrf.mxu0
  %v182 = vadd.f32 0.0, %v181
  %v183 = vpop.f32.mrf.mxu0
  %v184 = vadd.f32 0.0, %v183
  %185 = vmatmul.bf16.gmra.mxu0 %v85
  %v186 = vpop.f32.mrf.mxu0
  %v187 = vadd.f32 0.0, %v186
  %v188 = vpop.f32.mrf.mxu0
  %v189 = vadd.f32 0.0, %v188
  %190 = vdwg.mxu0
  %v191 = vpack.c.bf16 %v152, %v152
  %v192 = vpack.c.bf16 %v154, %v154
  %v193 = vpack.c.bf16 %v157, %v157
  %v194 = vpack.c.bf16 %v159, %v159
  %v195 = vpack.c.bf16 %v162, %v162
  %v196 = vpack.c.bf16 %v164, %v164
  %v197 = vpack.c.bf16 %v167, %v167
  %v198 = vpack.c.bf16 %v169, %v169
  %v199 = vpack.c.bf16 %v172, %v172
  %v200 = vpack.c.bf16 %v174, %v174
  %v201 = vpack.c.bf16 %v177, %v177
  %v202 = vpack.c.bf16 %v179, %v179
  %v203 = vpack.c.bf16 %v182, %v182
  %v204 = vpack.c.bf16 %v184, %v184
  %v205 = vpack.c.bf16 %v187, %v187
  %v206 = vpack.c.bf16 %v189, %v189
  %207 = vst [vmem:[%s3] sm:$0xf] %v191
  %208 = vst [vmem:[%s3 + $0x4] sm:$0xf] %v192
  %209 = vst [vmem:[%s3 + $0x8] sm:$0xf] %v193
  %210 = vst [vmem:[%s3 + $0xc] sm:$0xf] %v194
  %211 = vst [vmem:[%s3 + $0x10] sm:$0xf] %v195
  %212 = vst [vmem:[%s3 + $0x14] sm:$0xf] %v196
  %213 = vst [vmem:[%s3 + $0x18] sm:$0xf] %v197
  %214 = vst [vmem:[%s3 + $0x1c] sm:$0xf] %v198
  %215 = vst [vmem:[%s3 + $0x20] sm:$0xf] %v199
  %216 = vst [vmem:[%s3 + $0x24] sm:$0xf] %v200
  %217 = vst [vmem:[%s3 + $0x28] sm:$0xf] %v201
  %218 = vst [vmem:[%s3 + $0x2c] sm:$0xf] %v202
  %219 = vst [vmem:[%s3 + $0x30] sm:$0xf] %v203
  %220 = vst [vmem:[%s3 + $0x34] sm:$0xf] %v204
  %221 = vst [vmem:[%s3 + $0x38] sm:$0xf] %v205
  %222 = vst [vmem:[%s3 + $0x3c] sm:$0xf] %v206
  // Predicated region
  $region14: #{_forward.6} parent=0 // pred_check
    _
  $region15: #{_forward.6} parent=0 // pred_check_branch
    %224 = sbr.rel (0) target = $region17
  $region16: #{_forward.6} parent=0 // pred_region
    _
  $region17: #{_forward.6} parent=0 // pred_fallthru
    _
  // Predicated region
  $region18: #{_forward.6} parent=0 // pred_check
    _
  $region19: #{_forward.6} parent=0 // pred_check_branch
    %226 = sbr.rel (0) target = $region21
  $region20: #{_forward.6} parent=0 // pred_region
    _
  $region21: #{_forward.6} parent=0 // pred_fallthru
    _

// kernel: _forward.7
$region0: #{_forward.7}
  #allocation0 [shape = 'u32[]', space=smem, size = 0x4, offset = 0x4, fixed_abs, tag = 'smem constant byte address 0x4 - core index']
  #allocation1 [shape = 'u32[72,128]{1,0:T(1,128)}', space=vmem, size = 0x9000, scoped, tag = 'internal scratch']
  #allocation2 [shape = 'f32[128,128]{1,0:T(8,128)}', space=vmem, size = 0x10000, scoped, tag = 'scratch operand']
  %s0 = inlined_call_operand.vmem [shape: bf16[128,128], index: 0, kind: input, shape index: {}]
  %s1 = inlined_call_operand.vmem [shape: bf16[128,128], index: 1, kind: input, shape index: {}]
  %s2 = inlined_call_operand.vmem [shape: f32[1,128], index: 2, kind: input, shape index: {}]
  %s3 = inlined_call_operand.vmem [shape: bf16[128,128], index: 3, kind: output, shape index: {}]
  %s4 = sld [smem:[#allocation0]]
  $region30: #{_forward.7} parent=0
    _
  %s6 = ssub.s32 1, %s4
  %s7 = scalar_select 0, %s6, %s4
  // Predicated region
  $region2: #{_forward.7} parent=0 // pred_check
    _
  $region3: #{_forward.7} parent=0 // pred_check_branch
    %9 = sbr.rel (0) target = $region5
  $region4: #{_forward.7} parent=0 // pred_region
    _
  $region5: #{_forward.7} parent=0 // pred_fallthru
    _
  // Predicated region
  $region6: #{_forward.7} parent=0 // pred_check
    _
  $region7: #{_forward.7} parent=0 // pred_check_branch
    %11 = sbr.rel (0) target = $region9
  $region8: #{_forward.7} parent=0 // pred_region
    _
  $region9: #{_forward.7} parent=0 // pred_fallthru
    _
  // Predicated region
  $region10: #{_forward.7} parent=0 // pred_check
    _
  $region11: #{_forward.7} parent=0 // pred_check_branch
    %13 = sbr.rel (0) target = $region13
  $region12: #{_forward.7} parent=0 // pred_region
    _
  $region13: #{_forward.7} parent=0 // pred_fallthru
    _
  %p14 = scmp.eq.s32.totalorder 0, 0
  // Predicated region
  $region14: #{_forward.7} parent=0 // pred_check
    %p15 = pneg %p14
  $region15: #{_forward.7} parent=0 // pred_check_branch
    %17 = sbr.rel (%p15) target = $region17
  $region16: #{_forward.7} parent=0 // pred_region
    %18 = vst [vmem:[#allocation2] sm:$0xff] 0.0
    %19 = vst [vmem:[#allocation2 + $0x8] sm:$0xff] 0.0
    %20 = vst [vmem:[#allocation2 + $0x10] sm:$0xff] 0.0
    %21 = vst [vmem:[#allocation2 + $0x18] sm:$0xff] 0.0
    %22 = vst [vmem:[#allocation2 + $0x20] sm:$0xff] 0.0
    %23 = vst [vmem:[#allocation2 + $0x28] sm:$0xff] 0.0
    %24 = vst [vmem:[#allocation2 + $0x30] sm:$0xff] 0.0
    %25 = vst [vmem:[#allocation2 + $0x38] sm:$0xff] 0.0
    %26 = vst [vmem:[#allocation2 + $0x40] sm:$0xff] 0.0
    %27 = vst [vmem:[#allocation2 + $0x48] sm:$0xff] 0.0
    %28 = vst [vmem:[#allocation2 + $0x50] sm:$0xff] 0.0
    %29 = vst [vmem:[#allocation2 + $0x58] sm:$0xff] 0.0
    %30 = vst [vmem:[#allocation2 + $0x60] sm:$0xff] 0.0
    %31 = vst [vmem:[#allocation2 + $0x68] sm:$0xff] 0.0
    %32 = vst [vmem:[#allocation2 + $0x70] sm:$0xff] 0.0
    %33 = vst [vmem:[#allocation2 + $0x78] sm:$0xff] 0.0
  $region17: #{_forward.7} parent=0 // pred_fallthru
    _
  %s34 = smul.u32 0, 128
  %s35 = sshra.s32 %s34, 3
  %s36 = sand.u32 %s34, 7
  %s37 = smul.addr %s35, 4
  %s38 = scalar_lea.vmem %s1, %s37
  %v39 = vld [vmem:[%s38] sm:$0xf]
  %v40 = vld [vmem:[%s38 + $0x4] sm:$0xf]
  %v41 = vld [vmem:[%s38 + $0x8] sm:$0xf]
  %v42 = vld [vmem:[%s38 + $0xc] sm:$0xf]
  %v43 = vld [vmem:[%s38 + $0x10] sm:$0xf]
  %v44 = vld [vmem:[%s38 + $0x14] sm:$0xf]
  %v45 = vld [vmem:[%s38 + $0x18] sm:$0xf]
  %v46 = vld [vmem:[%s38 + $0x1c] sm:$0xf]
  %v47 = vld [vmem:[%s38 + $0x20] sm:$0xf]
  %v48 = vld [vmem:[%s38 + $0x24] sm:$0xf]
  %v49 = vld [vmem:[%s38 + $0x28] sm:$0xf]
  %v50 = vld [vmem:[%s38 + $0x2c] sm:$0xf]
  %v51 = vld [vmem:[%s38 + $0x30] sm:$0xf]
  %v52 = vld [vmem:[%s38 + $0x34] sm:$0xf]
  %v53 = vld [vmem:[%s38 + $0x38] sm:$0xf]
  %v54 = vld [vmem:[%s38 + $0x3c] sm:$0xf]
  %v55 = vld [vmem:[#allocation2] sm:$0xff]
  %v56 = vld [vmem:[#allocation2 + $0x8] sm:$0xff]
  %v57 = vld [vmem:[#allocation2 + $0x10] sm:$0xff]
  %v58 = vld [vmem:[#allocation2 + $0x18] sm:$0xff]
  %v59 = vld [vmem:[#allocation2 + $0x20] sm:$0xff]
  %v60 = vld [vmem:[#allocation2 + $0x28] sm:$0xff]
  %v61 = vld [vmem:[#allocation2 + $0x30] sm:$0xff]
  %v62 = vld [vmem:[#allocation2 + $0x38] sm:$0xff]
  %v63 = vld [vmem:[#allocation2 + $0x40] sm:$0xff]
  %v64 = vld [vmem:[#allocation2 + $0x48] sm:$0xff]
  %v65 = vld [vmem:[#allocation2 + $0x50] sm:$0xff]
  %v66 = vld [vmem:[#allocation2 + $0x58] sm:$0xff]
  %v67 = vld [vmem:[#allocation2 + $0x60] sm:$0xff]
  %v68 = vld [vmem:[#allocation2 + $0x68] sm:$0xff]
  %v69 = vld [vmem:[#allocation2 + $0x70] sm:$0xff]
  %v70 = vld [vmem:[#allocation2 + $0x78] sm:$0xff]
  %v71 = vld [vmem:[%s0] sm:$0xf]
  %v72 = vld [vmem:[%s0 + $0x4] sm:$0xf]
  %v73 = vld [vmem:[%s0 + $0x8] sm:$0xf]
  %v74 = vld [vmem:[%s0 + $0xc] sm:$0xf]
  %v75 = vld [vmem:[%s0 + $0x10] sm:$0xf]
  %v76 = vld [vmem:[%s0 + $0x14] sm:$0xf]
  %v77 = vld [vmem:[%s0 + $0x18] sm:$0xf]
  %v78 = vld [vmem:[%s0 + $0x1c] sm:$0xf]
  %v79 = vld [vmem:[%s0 + $0x20] sm:$0xf]
  %v80 = vld [vmem:[%s0 + $0x24] sm:$0xf]
  %v81 = vld [vmem:[%s0 + $0x28] sm:$0xf]
  %v82 = vld [vmem:[%s0 + $0x2c] sm:$0xf]
  %v83 = vld [vmem:[%s0 + $0x30] sm:$0xf]
  %v84 = vld [vmem:[%s0 + $0x34] sm:$0xf]
  %v85 = vld [vmem:[%s0 + $0x38] sm:$0xf]
  %v86 = vld [vmem:[%s0 + $0x3c] sm:$0xf]
  %v103 = vunpack.c.l.b16 %v71
  %v104 = vunpack.c.l.b16 %v72
  %v105 = vunpack.c.l.b16 %v73
  %v106 = vunpack.c.l.b16 %v74
  %v107 = vunpack.c.l.b16 %v75
  %v108 = vunpack.c.l.b16 %v76
  %v109 = vunpack.c.l.b16 %v77
  %v110 = vunpack.c.l.b16 %v78
  %v111 = vunpack.c.l.b16 %v79
  %v112 = vunpack.c.l.b16 %v80
  %v113 = vunpack.c.l.b16 %v81
  %v114 = vunpack.c.l.b16 %v82
  %v115 = vunpack.c.l.b16 %v83
  %v116 = vunpack.c.l.b16 %v84
  %v117 = vunpack.c.l.b16 %v85
  %v118 = vunpack.c.l.b16 %v86
  %v119 = vpack.c.b16 %v104, %v103
  %v120 = vpack.c.b16 %v106, %v105
  %v121 = vpack.c.b16 %v108, %v107
  %v122 = vpack.c.b16 %v110, %v109
  %v123 = vpack.c.b16 %v112, %v111
  %v124 = vpack.c.b16 %v114, %v113
  %v125 = vpack.c.b16 %v116, %v115
  %v126 = vpack.c.b16 %v118, %v117
  %v151 = vunpack.c.l.b16 %v39
  %v152 = vunpack.c.l.b16 %v40
  %v153 = vunpack.c.l.b16 %v41
  %v154 = vunpack.c.l.b16 %v42
  %v155 = vunpack.c.l.b16 %v43
  %v156 = vunpack.c.l.b16 %v44
  %v157 = vunpack.c.l.b16 %v45
  %v158 = vunpack.c.l.b16 %v46
  %v159 = vunpack.c.l.b16 %v47
  %v160 = vunpack.c.l.b16 %v48
  %v161 = vunpack.c.l.b16 %v49
  %v162 = vunpack.c.l.b16 %v50
  %v163 = vunpack.c.l.b16 %v51
  %v164 = vunpack.c.l.b16 %v52
  %v165 = vunpack.c.l.b16 %v53
  %v166 = vunpack.c.l.b16 %v54
  %v167 = vpack.c.b16 %v152, %v151
  %v168 = vpack.c.b16 %v154, %v153
  %v169 = vpack.c.b16 %v156, %v155
  %v170 = vpack.c.b16 %v158, %v157
  %v171 = vpack.c.b16 %v160, %v159
  %v172 = vpack.c.b16 %v162, %v161
  %v173 = vpack.c.b16 %v164, %v163
  %v174 = vpack.c.b16 %v166, %v165
  %183 = vmatpush.bf16.msra.mxu0 %v174
  %184 = vmatpush.bf16.msra.mxu0 %v173
  %185 = vmatpush.bf16.msra.mxu0 %v172
  %186 = vmatpush.bf16.msra.mxu0 %v171
  %187 = vmatpush.bf16.msra.mxu0 %v170
  %188 = vmatpush.bf16.msra.mxu0 %v169
  %189 = vmatpush.bf16.msra.mxu0 %v168
  %190 = vmatpush.bf16.msra.mxu0 %v167
  %191 = vmatmul.bf16.gmra.mxu0 %v119
  %v192 = vpop.f32.mrf.mxu0
  %v193 = vadd.f32 0.0, %v192
  %v194 = vpop.f32.mrf.mxu0
  %v195 = vadd.f32 0.0, %v194
  %196 = vmatmul.bf16.gmra.mxu0 %v120
  %v197 = vpop.f32.mrf.mxu0
  %v198 = vadd.f32 0.0, %v197
  %v199 = vpop.f32.mrf.mxu0
  %v200 = vadd.f32 0.0, %v199
  %201 = vmatmul.bf16.gmra.mxu0 %v121
  %v202 = vpop.f32.mrf.mxu0
  %v203 = vadd.f32 0.0, %v202
  %v204 = vpop.f32.mrf.mxu0
  %v205 = vadd.f32 0.0, %v204
  %206 = vmatmul.bf16.gmra.mxu0 %v122
  %v207 = vpop.f32.mrf.mxu0
  %v208 = vadd.f32 0.0, %v207
  %v209 = vpop.f32.mrf.mxu0
  %v210 = vadd.f32 0.0, %v209
  %211 = vmatmul.bf16.gmra.mxu0 %v123
  %v212 = vpop.f32.mrf.mxu0
  %v213 = vadd.f32 0.0, %v212
  %v214 = vpop.f32.mrf.mxu0
  %v215 = vadd.f32 0.0, %v214
  %216 = vmatmul.bf16.gmra.mxu0 %v124
  %v217 = vpop.f32.mrf.mxu0
  %v218 = vadd.f32 0.0, %v217
  %v219 = vpop.f32.mrf.mxu0
  %v220 = vadd.f32 0.0, %v219
  %221 = vmatmul.bf16.gmra.mxu0 %v125
  %v222 = vpop.f32.mrf.mxu0
  %v223 = vadd.f32 0.0, %v222
  %v224 = vpop.f32.mrf.mxu0
  %v225 = vadd.f32 0.0, %v224
  %226 = vmatmul.bf16.gmra.mxu0 %v126
  %v227 = vpop.f32.mrf.mxu0
  %v228 = vadd.f32 0.0, %v227
  %v229 = vpop.f32.mrf.mxu0
  %v230 = vadd.f32 0.0, %v229
  %231 = vdwg.mxu0
  %v232 = vadd.f32 %v55, %v193
  %v233 = vadd.f32 %v56, %v195
  %v234 = vadd.f32 %v57, %v198
  %v235 = vadd.f32 %v58, %v200
  %v236 = vadd.f32 %v59, %v203
  %v237 = vadd.f32 %v60, %v205
  %v238 = vadd.f32 %v61, %v208
  %v239 = vadd.f32 %v62, %v210
  %v240 = vadd.f32 %v63, %v213
  %v241 = vadd.f32 %v64, %v215
  %v242 = vadd.f32 %v65, %v218
  %v243 = vadd.f32 %v66, %v220
  %v244 = vadd.f32 %v67, %v223
  %v245 = vadd.f32 %v68, %v225
  %v246 = vadd.f32 %v69, %v228
  %v247 = vadd.f32 %v70, %v230
  %248 = vst [vmem:[#allocation2] sm:$0xff] %v232
  %249 = vst [vmem:[#allocation2 + $0x8] sm:$0xff] %v233
  %250 = vst [vmem:[#allocation2 + $0x10] sm:$0xff] %v234
  %251 = vst [vmem:[#allocation2 + $0x18] sm:$0xff] %v235
  %252 = vst [vmem:[#allocation2 + $0x20] sm:$0xff] %v236
  %253 = vst [vmem:[#allocation2 + $0x28] sm:$0xff] %v237
  %254 = vst [vmem:[#allocation2 + $0x30] sm:$0xff] %v238
  %255 = vst [vmem:[#allocation2 + $0x38] sm:$0xff] %v239
  %256 = vst [vmem:[#allocation2 + $0x40] sm:$0xff] %v240
  %257 = vst [vmem:[#allocation2 + $0x48] sm:$0xff] %v241
  %258 = vst [vmem:[#allocation2 + $0x50] sm:$0xff] %v242
  %259 = vst [vmem:[#allocation2 + $0x58] sm:$0xff] %v243
  %260 = vst [vmem:[#allocation2 + $0x60] sm:$0xff] %v244
  %261 = vst [vmem:[#allocation2 + $0x68] sm:$0xff] %v245
  %262 = vst [vmem:[#allocation2 + $0x70] sm:$0xff] %v246
  %263 = vst [vmem:[#allocation2 + $0x78] sm:$0xff] %v247
  // Predicated region
  $region18: #{_forward.7} parent=0 // pred_check
    %p264 = pneg %p14
  $region19: #{_forward.7} parent=0 // pred_check_branch
    %266 = sbr.rel (%p264) target = $region21
  $region20: #{_forward.7} parent=0 // pred_region
    %v267 = vld [vmem:[#allocation2] sm:$0xff]
    %v268 = vld [vmem:[#allocation2 + $0x8] sm:$0xff]
    %v269 = vld [vmem:[#allocation2 + $0x10] sm:$0xff]
    %v270 = vld [vmem:[#allocation2 + $0x18] sm:$0xff]
    %v271 = vld [vmem:[#allocation2 + $0x20] sm:$0xff]
    %v272 = vld [vmem:[#allocation2 + $0x28] sm:$0xff]
    %v273 = vld [vmem:[#allocation2 + $0x30] sm:$0xff]
    %v274 = vld [vmem:[#allocation2 + $0x38] sm:$0xff]
    %v275 = vld [vmem:[#allocation2 + $0x40] sm:$0xff]
    %v276 = vld [vmem:[#allocation2 + $0x48] sm:$0xff]
    %v277 = vld [vmem:[#allocation2 + $0x50] sm:$0xff]
    %v278 = vld [vmem:[#allocation2 + $0x58] sm:$0xff]
    %v279 = vld [vmem:[#allocation2 + $0x60] sm:$0xff]
    %v280 = vld [vmem:[#allocation2 + $0x68] sm:$0xff]
    %v281 = vld [vmem:[#allocation2 + $0x70] sm:$0xff]
    %v282 = vld [vmem:[#allocation2 + $0x78] sm:$0xff]
    %v283 = vld [vmem:[%s2] sm:$0x1]
    %v285 = vperm.slane %v283, 0
    %v287 = vadd.f32 %v267, %v285
    %v288 = vadd.f32 %v268, %v285
    %v289 = vadd.f32 %v269, %v285
    %v290 = vadd.f32 %v270, %v285
    %v291 = vadd.f32 %v271, %v285
    %v292 = vadd.f32 %v272, %v285
    %v293 = vadd.f32 %v273, %v285
    %v294 = vadd.f32 %v274, %v285
    %v295 = vadd.f32 %v275, %v285
    %v296 = vadd.f32 %v276, %v285
    %v297 = vadd.f32 %v277, %v285
    %v298 = vadd.f32 %v278, %v285
    %v299 = vadd.f32 %v279, %v285
    %v300 = vadd.f32 %v280, %v285
    %v301 = vadd.f32 %v281, %v285
    %v302 = vadd.f32 %v282, %v285
    %v303 = vmax.f32 %v287, 0.0
    %v304 = vmax.f32 %v288, 0.0
    %v305 = vmax.f32 %v289, 0.0
    %v306 = vmax.f32 %v290, 0.0
    %v307 = vmax.f32 %v291, 0.0
    %v308 = vmax.f32 %v292, 0.0
    %v309 = vmax.f32 %v293, 0.0
    %v310 = vmax.f32 %v294, 0.0
    %v311 = vmax.f32 %v295, 0.0
    %v312 = vmax.f32 %v296, 0.0
    %v313 = vmax.f32 %v297, 0.0
    %v314 = vmax.f32 %v298, 0.0
    %v315 = vmax.f32 %v299, 0.0
    %v316 = vmax.f32 %v300, 0.0
    %v317 = vmax.f32 %v301, 0.0
    %v318 = vmax.f32 %v302, 0.0
    %v319 = vpack.c.bf16 %v303, %v303
    %v320 = vpack.c.bf16 %v304, %v304
    %v321 = vpack.c.bf16 %v305, %v305
    %v322 = vpack.c.bf16 %v306, %v306
    %v323 = vpack.c.bf16 %v307, %v307
    %v324 = vpack.c.bf16 %v308, %v308
    %v325 = vpack.c.bf16 %v309, %v309
    %v326 = vpack.c.bf16 %v310, %v310
    %v327 = vpack.c.bf16 %v311, %v311
    %v328 = vpack.c.bf16 %v312, %v312
    %v329 = vpack.c.bf16 %v313, %v313
    %v330 = vpack.c.bf16 %v314, %v314
    %v331 = vpack.c.bf16 %v315, %v315
    %v332 = vpack.c.bf16 %v316, %v316
    %v333 = vpack.c.bf16 %v317, %v317
    %v334 = vpack.c.bf16 %v318, %v318
    %335 = vst [vmem:[%s3] sm:$0xf] %v319
    %336 = vst [vmem:[%s3 + $0x4] sm:$0xf] %v320
    %337 = vst [vmem:[%s3 + $0x8] sm:$0xf] %v321
    %338 = vst [vmem:[%s3 + $0xc] sm:$0xf] %v322
    %339 = vst [vmem:[%s3 + $0x10] sm:$0xf] %v323
    %340 = vst [vmem:[%s3 + $0x14] sm:$0xf] %v324
    %341 = vst [vmem:[%s3 + $0x18] sm:$0xf] %v325
    %342 = vst [vmem:[%s3 + $0x1c] sm:$0xf] %v326
    %343 = vst [vmem:[%s3 + $0x20] sm:$0xf] %v327
    %344 = vst [vmem:[%s3 + $0x24] sm:$0xf] %v328
    %345 = vst [vmem:[%s3 + $0x28] sm:$0xf] %v329
    %346 = vst [vmem:[%s3 + $0x2c] sm:$0xf] %v330
    %347 = vst [vmem:[%s3 + $0x30] sm:$0xf] %v331
    %348 = vst [vmem:[%s3 + $0x34] sm:$0xf] %v332
    %349 = vst [vmem:[%s3 + $0x38] sm:$0xf] %v333
    %350 = vst [vmem:[%s3 + $0x3c] sm:$0xf] %v334
  $region21: #{_forward.7} parent=0 // pred_fallthru
    _
  // Predicated region
  $region22: #{_forward.7} parent=0 // pred_check
    _
  $region23: #{_forward.7} parent=0 // pred_check_branch
    %352 = sbr.rel (0) target = $region25
  $region24: #{_forward.7} parent=0 // pred_region
    _
  $region25: #{_forward.7} parent=0 // pred_fallthru
    _
  // Predicated region
  $region26: #{_forward.7} parent=0 // pred_check
    _
  $region27: #{_forward.7} parent=0 // pred_check_branch
    %354 = sbr.rel (0) target = $region29
  $region28: #{_forward.7} parent=0 // pred_region
    _
  $region29: #{_forward.7} parent=0 // pred_fallthru
    _

// kernel: _forward.11
$region0: #{_forward.11}
  #allocation0 [shape = 'u32[]', space=smem, size = 0x4, offset = 0x4, fixed_abs, tag = 'smem constant byte address 0x4 - core index']
  #allocation1 [shape = 'u32[72,128]{1,0:T(1,128)}', space=vmem, size = 0x9000, scoped, tag = 'internal scratch']
  #allocation2 [shape = 'f32[128,128]{1,0:T(8,128)}', space=vmem, size = 0x10000, scoped, tag = 'scratch operand']
  %s0 = inlined_call_operand.vmem [shape: bf16[128,128], index: 0, kind: input, shape index: {}]
  %s1 = inlined_call_operand.vmem [shape: bf16[128,128], index: 1, kind: input, shape index: {}]
  %s2 = inlined_call_operand.vmem [shape: f32[1,128], index: 2, kind: input, shape index: {}]
  %s3 = inlined_call_operand.vmem [shape: f32[128,128], index: 3, kind: output, shape index: {}]
  %s4 = sld [smem:[#allocation0]]
  $region30: #{_forward.11} parent=0
    _
  %s6 = ssub.s32 1, %s4
  %s7 = scalar_select 0, %s6, %s4
  // Predicated region
  $region2: #{_forward.11} parent=0 // pred_check
    _
  $region3: #{_forward.11} parent=0 // pred_check_branch
    %9 = sbr.rel (0) target = $region5
  $region4: #{_forward.11} parent=0 // pred_region
    _
  $region5: #{_forward.11} parent=0 // pred_fallthru
    _
  // Predicated region
  $region6: #{_forward.11} parent=0 // pred_check
    _
  $region7: #{_forward.11} parent=0 // pred_check_branch
    %11 = sbr.rel (0) target = $region9
  $region8: #{_forward.11} parent=0 // pred_region
    _
  $region9: #{_forward.11} parent=0 // pred_fallthru
    _
  // Predicated region
  $region10: #{_forward.11} parent=0 // pred_check
    _
  $region11: #{_forward.11} parent=0 // pred_check_branch
    %13 = sbr.rel (0) target = $region13
  $region12: #{_forward.11} parent=0 // pred_region
    _
  $region13: #{_forward.11} parent=0 // pred_fallthru
    _
  %p14 = scmp.eq.s32.totalorder 0, 0
  // Predicated region
  $region14: #{_forward.11} parent=0 // pred_check
    %p15 = pneg %p14
  $region15: #{_forward.11} parent=0 // pred_check_branch
    %17 = sbr.rel (%p15) target = $region17
  $region16: #{_forward.11} parent=0 // pred_region
    %18 = vst [vmem:[#allocation2] sm:$0xff] 0.0
    %19 = vst [vmem:[#allocation2 + $0x8] sm:$0xff] 0.0
    %20 = vst [vmem:[#allocation2 + $0x10] sm:$0xff] 0.0
    %21 = vst [vmem:[#allocation2 + $0x18] sm:$0xff] 0.0
    %22 = vst [vmem:[#allocation2 + $0x20] sm:$0xff] 0.0
    %23 = vst [vmem:[#allocation2 + $0x28] sm:$0xff] 0.0
    %24 = vst [vmem:[#allocation2 + $0x30] sm:$0xff] 0.0
    %25 = vst [vmem:[#allocation2 + $0x38] sm:$0xff] 0.0
    %26 = vst [vmem:[#allocation2 + $0x40] sm:$0xff] 0.0
    %27 = vst [vmem:[#allocation2 + $0x48] sm:$0xff] 0.0
    %28 = vst [vmem:[#allocation2 + $0x50] sm:$0xff] 0.0
    %29 = vst [vmem:[#allocation2 + $0x58] sm:$0xff] 0.0
    %30 = vst [vmem:[#allocation2 + $0x60] sm:$0xff] 0.0
    %31 = vst [vmem:[#allocation2 + $0x68] sm:$0xff] 0.0
    %32 = vst [vmem:[#allocation2 + $0x70] sm:$0xff] 0.0
    %33 = vst [vmem:[#allocation2 + $0x78] sm:$0xff] 0.0
  $region17: #{_forward.11} parent=0 // pred_fallthru
    _
  %s34 = smul.u32 0, 128
  %s35 = sshra.s32 %s34, 3
  %s36 = sand.u32 %s34, 7
  %s37 = smul.addr %s35, 4
  %s38 = scalar_lea.vmem %s1, %s37
  %v39 = vld [vmem:[%s38] sm:$0xf]
  %v40 = vld [vmem:[%s38 + $0x4] sm:$0xf]
  %v41 = vld [vmem:[%s38 + $0x8] sm:$0xf]
  %v42 = vld [vmem:[%s38 + $0xc] sm:$0xf]
  %v43 = vld [vmem:[%s38 + $0x10] sm:$0xf]
  %v44 = vld [vmem:[%s38 + $0x14] sm:$0xf]
  %v45 = vld [vmem:[%s38 + $0x18] sm:$0xf]
  %v46 = vld [vmem:[%s38 + $0x1c] sm:$0xf]
  %v47 = vld [vmem:[%s38 + $0x20] sm:$0xf]
  %v48 = vld [vmem:[%s38 + $0x24] sm:$0xf]
  %v49 = vld [vmem:[%s38 + $0x28] sm:$0xf]
  %v50 = vld [vmem:[%s38 + $0x2c] sm:$0xf]
  %v51 = vld [vmem:[%s38 + $0x30] sm:$0xf]
  %v52 = vld [vmem:[%s38 + $0x34] sm:$0xf]
  %v53 = vld [vmem:[%s38 + $0x38] sm:$0xf]
  %v54 = vld [vmem:[%s38 + $0x3c] sm:$0xf]
  %v55 = vld [vmem:[#allocation2] sm:$0xff]
  %v56 = vld [vmem:[#allocation2 + $0x8] sm:$0xff]
  %v57 = vld [vmem:[#allocation2 + $0x10] sm:$0xff]
  %v58 = vld [vmem:[#allocation2 + $0x18] sm:$0xff]
  %v59 = vld [vmem:[#allocation2 + $0x20] sm:$0xff]
  %v60 = vld [vmem:[#allocation2 + $0x28] sm:$0xff]
  %v61 = vld [vmem:[#allocation2 + $0x30] sm:$0xff]
  %v62 = vld [vmem:[#allocation2 + $0x38] sm:$0xff]
  %v63 = vld [vmem:[#allocation2 + $0x40] sm:$0xff]
  %v64 = vld [vmem:[#allocation2 + $0x48] sm:$0xff]
  %v65 = vld [vmem:[#allocation2 + $0x50] sm:$0xff]
  %v66 = vld [vmem:[#allocation2 + $0x58] sm:$0xff]
  %v67 = vld [vmem:[#allocation2 + $0x60] sm:$0xff]
  %v68 = vld [vmem:[#allocation2 + $0x68] sm:$0xff]
  %v69 = vld [vmem:[#allocation2 + $0x70] sm:$0xff]
  %v70 = vld [vmem:[#allocation2 + $0x78] sm:$0xff]
  %v71 = vld [vmem:[%s0] sm:$0xf]
  %v72 = vld [vmem:[%s0 + $0x4] sm:$0xf]
  %v73 = vld [vmem:[%s0 + $0x8] sm:$0xf]
  %v74 = vld [vmem:[%s0 + $0xc] sm:$0xf]
  %v75 = vld [vmem:[%s0 + $0x10] sm:$0xf]
  %v76 = vld [vmem:[%s0 + $0x14] sm:$0xf]
  %v77 = vld [vmem:[%s0 + $0x18] sm:$0xf]
  %v78 = vld [vmem:[%s0 + $0x1c] sm:$0xf]
  %v79 = vld [vmem:[%s0 + $0x20] sm:$0xf]
  %v80 = vld [vmem:[%s0 + $0x24] sm:$0xf]
  %v81 = vld [vmem:[%s0 + $0x28] sm:$0xf]
  %v82 = vld [vmem:[%s0 + $0x2c] sm:$0xf]
  %v83 = vld [vmem:[%s0 + $0x30] sm:$0xf]
  %v84 = vld [vmem:[%s0 + $0x34] sm:$0xf]
  %v85 = vld [vmem:[%s0 + $0x38] sm:$0xf]
  %v86 = vld [vmem:[%s0 + $0x3c] sm:$0xf]
  %v103 = vunpack.c.l.b16 %v71
  %v104 = vunpack.c.l.b16 %v72
  %v105 = vunpack.c.l.b16 %v73
  %v106 = vunpack.c.l.b16 %v74
  %v107 = vunpack.c.l.b16 %v75
  %v108 = vunpack.c.l.b16 %v76
  %v109 = vunpack.c.l.b16 %v77
  %v110 = vunpack.c.l.b16 %v78
  %v111 = vunpack.c.l.b16 %v79
  %v112 = vunpack.c.l.b16 %v80
  %v113 = vunpack.c.l.b16 %v81
  %v114 = vunpack.c.l.b16 %v82
  %v115 = vunpack.c.l.b16 %v83
  %v116 = vunpack.c.l.b16 %v84
  %v117 = vunpack.c.l.b16 %v85
  %v118 = vunpack.c.l.b16 %v86
  %v119 = vpack.c.b16 %v104, %v103
  %v120 = vpack.c.b16 %v106, %v105
  %v121 = vpack.c.b16 %v108, %v107
  %v122 = vpack.c.b16 %v110, %v109
  %v123 = vpack.c.b16 %v112, %v111
  %v124 = vpack.c.b16 %v114, %v113
  %v125 = vpack.c.b16 %v116, %v115
  %v126 = vpack.c.b16 %v118, %v117
  %v151 = vunpack.c.l.b16 %v39
  %v152 = vunpack.c.l.b16 %v40
  %v153 = vunpack.c.l.b16 %v41
  %v154 = vunpack.c.l.b16 %v42
  %v155 = vunpack.c.l.b16 %v43
  %v156 = vunpack.c.l.b16 %v44
  %v157 = vunpack.c.l.b16 %v45
  %v158 = vunpack.c.l.b16 %v46
  %v159 = vunpack.c.l.b16 %v47
  %v160 = vunpack.c.l.b16 %v48
  %v161 = vunpack.c.l.b16 %v49
  %v162 = vunpack.c.l.b16 %v50
  %v163 = vunpack.c.l.b16 %v51
  %v164 = vunpack.c.l.b16 %v52
  %v165 = vunpack.c.l.b16 %v53
  %v166 = vunpack.c.l.b16 %v54
  %v167 = vpack.c.b16 %v152, %v151
  %v168 = vpack.c.b16 %v154, %v153
  %v169 = vpack.c.b16 %v156, %v155
  %v170 = vpack.c.b16 %v158, %v157
  %v171 = vpack.c.b16 %v160, %v159
  %v172 = vpack.c.b16 %v162, %v161
  %v173 = vpack.c.b16 %v164, %v163
  %v174 = vpack.c.b16 %v166, %v165
  %183 = vmatpush.bf16.msra.mxu0 %v174
  %184 = vmatpush.bf16.msra.mxu0 %v173
  %185 = vmatpush.bf16.msra.mxu0 %v172
  %186 = vmatpush.bf16.msra.mxu0 %v171
  %187 = vmatpush.bf16.msra.mxu0 %v170
  %188 = vmatpush.bf16.msra.mxu0 %v169
  %189 = vmatpush.bf16.msra.mxu0 %v168
  %190 = vmatpush.bf16.msra.mxu0 %v167
  %191 = vmatmul.bf16.gmra.mxu0 %v119
  %v192 = vpop.f32.mrf.mxu0
  %v193 = vadd.f32 0.0, %v192
  %v194 = vpop.f32.mrf.mxu0
  %v195 = vadd.f32 0.0, %v194
  %196 = vmatmul.bf16.gmra.mxu0 %v120
  %v197 = vpop.f32.mrf.mxu0
  %v198 = vadd.f32 0.0, %v197
  %v199 = vpop.f32.mrf.mxu0
  %v200 = vadd.f32 0.0, %v199
  %201 = vmatmul.bf16.gmra.mxu0 %v121
  %v202 = vpop.f32.mrf.mxu0
  %v203 = vadd.f32 0.0, %v202
  %v204 = vpop.f32.mrf.mxu0
  %v205 = vadd.f32 0.0, %v204
  %206 = vmatmul.bf16.gmra.mxu0 %v122
  %v207 = vpop.f32.mrf.mxu0
  %v208 = vadd.f32 0.0, %v207
  %v209 = vpop.f32.mrf.mxu0
  %v210 = vadd.f32 0.0, %v209
  %211 = vmatmul.bf16.gmra.mxu0 %v123
  %v212 = vpop.f32.mrf.mxu0
  %v213 = vadd.f32 0.0, %v212
  %v214 = vpop.f32.mrf.mxu0
  %v215 = vadd.f32 0.0, %v214
  %216 = vmatmul.bf16.gmra.mxu0 %v124
  %v217 = vpop.f32.mrf.mxu0
  %v218 = vadd.f32 0.0, %v217
  %v219 = vpop.f32.mrf.mxu0
  %v220 = vadd.f32 0.0, %v219
  %221 = vmatmul.bf16.gmra.mxu0 %v125
  %v222 = vpop.f32.mrf.mxu0
  %v223 = vadd.f32 0.0, %v222
  %v224 = vpop.f32.mrf.mxu0
  %v225 = vadd.f32 0.0, %v224
  %226 = vmatmul.bf16.gmra.mxu0 %v126
  %v227 = vpop.f32.mrf.mxu0
  %v228 = vadd.f32 0.0, %v227
  %v229 = vpop.f32.mrf.mxu0
  %v230 = vadd.f32 0.0, %v229
  %231 = vdwg.mxu0
  %v232 = vadd.f32 %v55, %v193
  %v233 = vadd.f32 %v56, %v195
  %v234 = vadd.f32 %v57, %v198
  %v235 = vadd.f32 %v58, %v200
  %v236 = vadd.f32 %v59, %v203
  %v237 = vadd.f32 %v60, %v205
  %v238 = vadd.f32 %v61, %v208
  %v239 = vadd.f32 %v62, %v210
  %v240 = vadd.f32 %v63, %v213
  %v241 = vadd.f32 %v64, %v215
  %v242 = vadd.f32 %v65, %v218
  %v243 = vadd.f32 %v66, %v220
  %v244 = vadd.f32 %v67, %v223
  %v245 = vadd.f32 %v68, %v225
  %v246 = vadd.f32 %v69, %v228
  %v247 = vadd.f32 %v70, %v230
  %248 = vst [vmem:[#allocation2] sm:$0xff] %v232
  %249 = vst [vmem:[#allocation2 + $0x8] sm:$0xff] %v233
  %250 = vst [vmem:[#allocation2 + $0x10] sm:$0xff] %v234
  %251 = vst [vmem:[#allocation2 + $0x18] sm:$0xff] %v235
  %252 = vst [vmem:[#allocation2 + $0x20] sm:$0xff] %v236
  %253 = vst [vmem:[#allocation2 + $0x28] sm:$0xff] %v237
  %254 = vst [vmem:[#allocation2 + $0x30] sm:$0xff] %v238
  %255 = vst [vmem:[#allocation2 + $0x38] sm:$0xff] %v239
  %256 = vst [vmem:[#allocation2 + $0x40] sm:$0xff] %v240
  %257 = vst [vmem:[#allocation2 + $0x48] sm:$0xff] %v241
  %258 = vst [vmem:[#allocation2 + $0x50] sm:$0xff] %v242
  %259 = vst [vmem:[#allocation2 + $0x58] sm:$0xff] %v243
  %260 = vst [vmem:[#allocation2 + $0x60] sm:$0xff] %v244
  %261 = vst [vmem:[#allocation2 + $0x68] sm:$0xff] %v245
  %262 = vst [vmem:[#allocation2 + $0x70] sm:$0xff] %v246
  %263 = vst [vmem:[#allocation2 + $0x78] sm:$0xff] %v247
  // Predicated region
  $region18: #{_forward.11} parent=0 // pred_check
    %p264 = pneg %p14
  $region19: #{_forward.11} parent=0 // pred_check_branch
    %266 = sbr.rel (%p264) target = $region21
  $region20: #{_forward.11} parent=0 // pred_region
    %v267 = vld [vmem:[#allocation2] sm:$0xff]
    %v268 = vld [vmem:[#allocation2 + $0x8] sm:$0xff]
    %v269 = vld [vmem:[#allocation2 + $0x10] sm:$0xff]
    %v270 = vld [vmem:[#allocation2 + $0x18] sm:$0xff]
    %v271 = vld [vmem:[#allocation2 + $0x20] sm:$0xff]
    %v272 = vld [vmem:[#allocation2 + $0x28] sm:$0xff]
    %v273 = vld [vmem:[#allocation2 + $0x30] sm:$0xff]
    %v274 = vld [vmem:[#allocation2 + $0x38] sm:$0xff]
    %v275 = vld [vmem:[#allocation2 + $0x40] sm:$0xff]
    %v276 = vld [vmem:[#allocation2 + $0x48] sm:$0xff]
    %v277 = vld [vmem:[#allocation2 + $0x50] sm:$0xff]
    %v278 = vld [vmem:[#allocation2 + $0x58] sm:$0xff]
    %v279 = vld [vmem:[#allocation2 + $0x60] sm:$0xff]
    %v280 = vld [vmem:[#allocation2 + $0x68] sm:$0xff]
    %v281 = vld [vmem:[#allocation2 + $0x70] sm:$0xff]
    %v282 = vld [vmem:[#allocation2 + $0x78] sm:$0xff]
    %v283 = vld [vmem:[%s2] sm:$0x1]
    %v285 = vperm.slane %v283, 0
    %v287 = vadd.f32 %v267, %v285
    %v288 = vadd.f32 %v268, %v285
    %v289 = vadd.f32 %v269, %v285
    %v290 = vadd.f32 %v270, %v285
    %v291 = vadd.f32 %v271, %v285
    %v292 = vadd.f32 %v272, %v285
    %v293 = vadd.f32 %v273, %v285
    %v294 = vadd.f32 %v274, %v285
    %v295 = vadd.f32 %v275, %v285
    %v296 = vadd.f32 %v276, %v285
    %v297 = vadd.f32 %v277, %v285
    %v298 = vadd.f32 %v278, %v285
    %v299 = vadd.f32 %v279, %v285
    %v300 = vadd.f32 %v280, %v285
    %v301 = vadd.f32 %v281, %v285
    %v302 = vadd.f32 %v282, %v285
    %303 = vst [vmem:[%s3] sm:$0xff] %v287
    %304 = vst [vmem:[%s3 + $0x8] sm:$0xff] %v288
    %305 = vst [vmem:[%s3 + $0x10] sm:$0xff] %v289
    %306 = vst [vmem:[%s3 + $0x18] sm:$0xff] %v290
    %307 = vst [vmem:[%s3 + $0x20] sm:$0xff] %v291
    %308 = vst [vmem:[%s3 + $0x28] sm:$0xff] %v292
    %309 = vst [vmem:[%s3 + $0x30] sm:$0xff] %v293
    %310 = vst [vmem:[%s3 + $0x38] sm:$0xff] %v294
    %311 = vst [vmem:[%s3 + $0x40] sm:$0xff] %v295
    %312 = vst [vmem:[%s3 + $0x48] sm:$0xff] %v296
    %313 = vst [vmem:[%s3 + $0x50] sm:$0xff] %v297
    %314 = vst [vmem:[%s3 + $0x58] sm:$0xff] %v298
    %315 = vst [vmem:[%s3 + $0x60] sm:$0xff] %v299
    %316 = vst [vmem:[%s3 + $0x68] sm:$0xff] %v300
    %317 = vst [vmem:[%s3 + $0x70] sm:$0xff] %v301
    %318 = vst [vmem:[%s3 + $0x78] sm:$0xff] %v302
  $region21: #{_forward.11} parent=0 // pred_fallthru
    _
  // Predicated region
  $region22: #{_forward.11} parent=0 // pred_check
    _
  $region23: #{_forward.11} parent=0 // pred_check_branch
    %320 = sbr.rel (0) target = $region25
  $region24: #{_forward.11} parent=0 // pred_region
    _
  $region25: #{_forward.11} parent=0 // pred_fallthru
    _
  // Predicated region
  $region26: #{_forward.11} parent=0 // pred_check
    _
  $region27: #{_forward.11} parent=0 // pred_check_branch
    %322 = sbr.rel (0) target = $region29
  $region28: #{_forward.11} parent=0 // pred_region
    _
  $region29: #{_forward.11} parent=0 // pred_fallthru
    _

</llo_original>
